<compile_context>
chip_gen: v7x
topology: tpu7x:2x2x1
jax: 0.10.0
libtpu: 0.0.40
codegen_flags: <defaults>
</compile_context>

<pallas_src>
import jax
import jax.numpy as jnp
from jax.experimental import pallas as pl
from jax.experimental.pallas import tpu as pltpu


def _decoder_kernel(x_ref, mask_ref, inv_row_ref, inv_col_ref, inv_all_ref,
                    w_ref, b_ref, out_ref):
    """One grid step == one exchangeable MatrixLayer on the VMEM-resident activation."""
    l = pl.program_id(0)
    num_layers = pl.num_programs(0)

    # Layer 0: seed the resident activation (output block) from the padded input.
    @pl.when(l == 0)
    def _():
        out_ref[...] = x_ref[...]

    x = out_ref[...]                   # (N, M, KP) f32 resident activation
    msk = mask_ref[...]                # (N, M, 1)  f32
    n, m, kp = x.shape

    # Masked pooling in f32.  For l > 0 the activation was already multiplied by
    # the (binary) mask at the end of the previous layer, so this multiply is a
    # mathematical no-op there; kept for non-binary-mask safety (cheap VPU op).
    xm = x * msk
    row_sum = jnp.sum(xm, axis=1)                       # (N, KP)  XLU sublane reduce
    col_sum = jnp.sum(xm, axis=0)                       # (M, KP)  VPU adds
    all_sum = jnp.sum(col_sum, axis=0, keepdims=True)   # (1, KP)

    # Hoisted reciprocal pooling denominators (computed once in the wrapper).
    row_mean = row_sum * inv_row_ref[...]               # (N, KP) * (N, 1)
    col_mean = col_sum * inv_col_ref[...]               # (M, KP) * (M, 1)
    all_mean = all_sum * inv_all_ref[...]               # (1, KP) * (1, 1)

    w_self = w_ref[0]                  # (KP, KP) bf16
    w_row = w_ref[1]
    w_col = w_ref[2]
    w_all = w_ref[3]
    b = b_ref[...]                     # (1, KP) f32

    bf = jnp.bfloat16
    # Factored form: full-rank self term + rank-1-along-N/M pooled terms.
    y_self = jnp.dot(x.reshape(n * m, kp).astype(bf), w_self,
                     preferred_element_type=jnp.float32).reshape(n, m, kp)
    y_row = jnp.dot(row_mean.astype(bf), w_row,
                    preferred_element_type=jnp.float32)        # (N, KP)
    y_col = jnp.dot(col_mean.astype(bf), w_col,
                    preferred_element_type=jnp.float32)        # (M, KP)
    y_all = jnp.dot(all_mean.astype(bf), w_all,
                    preferred_element_type=jnp.float32)        # (1, KP)

    y = (y_self
         + y_row[:, None, :]
         + y_col[None, :, :]
         + (y_all + b)[None, :, :])                            # (N, M, KP) f32

    # ReLU + mask between layers; last layer stays linear & unmasked.
    @pl.when(l < num_layers - 1)
    def _():
        out_ref[...] = jnp.maximum(y, 0.0) * msk

    @pl.when(l == num_layers - 1)
    def _():
        out_ref[...] = y


def decoder_forward(params, input_list, mask=None):
    """params: list of (w: (4, Kin, Kout), b: (1, Kout)); input_list: list of (N, M, d_i)."""
    state = jnp.concatenate([jnp.asarray(t, jnp.float32) for t in input_list], axis=2)
    n, m, e = state.shape
    dims = [e] + [w.shape[-1] for (w, _) in params]
    num_layers = len(params)

    # Lane-dense channel padding: all layer widths share one padded width KP.
    kp = 128 * pl.cdiv(max(dims), 128)

    x_p = jnp.zeros((n, m, kp), jnp.float32).at[:, :, :e].set(state)
    if mask is None:
        msk = jnp.ones((n, m, 1), jnp.float32)
    else:
        msk = jnp.asarray(mask, jnp.float32).reshape(n, m, 1)

    # Hoisted masked-mean denominators (clamped to >= 1), as reciprocals.
    inv_row = 1.0 / jnp.maximum(jnp.sum(msk, axis=1), 1.0)            # (N, 1)
    inv_col = 1.0 / jnp.maximum(jnp.sum(msk, axis=0), 1.0)            # (M, 1)
    inv_all = (1.0 / jnp.maximum(jnp.sum(msk), 1.0)).reshape(1, 1)    # (1, 1)

    # Pack per-layer weights (bf16 for the MXU) and biases (f32, added post-acc).
    w_p = jnp.zeros((num_layers, 4, kp, kp), jnp.bfloat16)
    b_p = jnp.zeros((num_layers, 1, kp), jnp.float32)
    for i, (w, b) in enumerate(params):
        kin, kout = w.shape[1], w.shape[2]
        w_p = w_p.at[i, :, :kin, :kout].set(jnp.asarray(w, jnp.float32).astype(jnp.bfloat16))
        b_p = b_p.at[i, 0, :kout].set(jnp.asarray(b, jnp.float32)[0])

    # Per-generation VMEM budget: ~3/4 of physical VMEM (96 MiB v5e/v6e, 48 MiB v7x).
    tpu_vmem = 64 * 1024 * 1024
    try:
        tpu_vmem = int(pltpu.get_tpu_info().vmem_capacity_bytes)
    except Exception:
        pass
    vmem_limit = (tpu_vmem * 3) // 4

    # Rough resident working-set guard (activation + aliased input block +
    # f32 temporaries + double-buffered bf16 weights + mask / pooled buffers).
    act_bytes = n * m * kp * 4
    working_set = 6 * act_bytes + 2 * (4 * kp * kp * 2) + 4 * n * m * 4
    if working_set > vmem_limit:
        # TODO(synk): tiled per-layer fallback (two-pass pool, then matmul).
        raise ValueError(
            f"activation too large for VMEM-resident decoder "
            f"(~{working_set} B needed > {vmem_limit} B budget)")

    flops = 2 * num_layers * kp * kp * (n * m + n + m + 1)
    bytes_accessed = (4 * (x_p.size + msk.size + inv_row.size + inv_col.size
                           + inv_all.size + b_p.size + n * m * kp)
                      + 2 * w_p.size)

    out_p = pl.pallas_call(
        _decoder_kernel,
        out_shape=jax.ShapeDtypeStruct((n, m, kp), jnp.float32),
        grid=(num_layers,),
        in_specs=[
            pl.BlockSpec((n, m, kp), lambda l: (0, 0, 0)),            # input (read at l==0)
            pl.BlockSpec((n, m, 1), lambda l: (0, 0, 0)),             # mask (fetched once)
            pl.BlockSpec((n, 1), lambda l: (0, 0)),                   # 1 / row count
            pl.BlockSpec((m, 1), lambda l: (0, 0)),                   # 1 / col count
            pl.BlockSpec((1, 1), lambda l: (0, 0)),                   # 1 / all count
            pl.BlockSpec((None, 4, kp, kp), lambda l: (l, 0, 0, 0)),  # per-layer weights
            pl.BlockSpec((None, 1, kp), lambda l: (l, 0, 0)),         # per-layer bias
        ],
        out_specs=pl.BlockSpec((n, m, kp), lambda l: (0, 0, 0)),      # VMEM-resident activation
        input_output_aliases={0: 0},                                  # x_p aliases the output
        compiler_params=pltpu.CompilerParams(
            dimension_semantics=("arbitrary",),                       # layers are sequential
            vmem_limit_bytes=int(vmem_limit)),
        cost_estimate=pl.CostEstimate(
            flops=flops, transcendentals=0, bytes_accessed=int(bytes_accessed)),
    )(x_p, msk, inv_row, inv_col, inv_all, w_p, b_p)

    return out_p[:, :, :dims[-1]]


def init_decoder(key, embedding_dim, units):
    """Deterministic init mirroring nn.Linear-style uniform(-1/sqrt(fan_in), ...)."""
    dims = [embedding_dim] + list(units)
    params = []
    for i in range(1, len(dims)):
        key, kw, kb = jax.random.split(key, 3)
        bound = 1.0 / float(dims[i - 1]) ** 0.5
        w = jax.random.uniform(kw, (4, dims[i - 1], dims[i]), jnp.float32, -bound, bound)
        b = jax.random.uniform(kb, (1, dims[i]), jnp.float32, -bound, bound)
        params.append((w, b))
    return params


# ----- pure-JAX reference (same reconstructed MatrixLayer semantics).
#       mxu_dtype=jnp.bfloat16 emulates the kernel's bf16-operand / f32-accumulate
#       matmuls so the comparison stays tight; float32 gives the original module math.
def _matrix_layer_ref(x, msk, w, b, mxu_dtype):
    xm = x * msk
    row_cnt = jnp.maximum(jnp.sum(msk, axis=1, keepdims=True), 1.0)
    col_cnt = jnp.maximum(jnp.sum(msk, axis=0, keepdims=True), 1.0)
    all_cnt = jnp.maximum(jnp.sum(msk, axis=(0, 1), keepdims=True), 1.0)
    row_mean = jnp.sum(xm, axis=1, keepdims=True) / row_cnt
    col_mean = jnp.sum(xm, axis=0, keepdims=True) / col_cnt
    all_mean = jnp.sum(xm, axis=(0, 1), keepdims=True) / all_cnt

    def mm(a, wt):
        return jnp.einsum("nmk,kj->nmj", a.astype(mxu_dtype), wt.astype(mxu_dtype),
                          preferred_element_type=jnp.float32)

    return mm(x, w[0]) + mm(row_mean, w[1]) + mm(col_mean, w[2]) + mm(all_mean, w[3]) + b


def decoder_ref(params, input_list, mask=None, activation="relu", mxu_dtype=jnp.float32):
    state = jnp.concatenate([jnp.asarray(t, jnp.float32) for t in input_list], axis=2)
    msk = (jnp.ones(state.shape[:2] + (1,), jnp.float32) if mask is None
           else jnp.asarray(mask, jnp.float32))
    last = len(params) - 1
    for i, (w, b) in enumerate(params):
        state = _matrix_layer_ref(state, msk, w, b, mxu_dtype)
        if i == last:
            break
        if activation == "relu":
            state = jnp.maximum(state, 0.0)
            if mask is not None:
                state = state * msk
    return state


if __name__ == "__main__":
    key = jax.random.PRNGKey(0)
    k1, k2, k3, k4 = jax.random.split(key, 4)

    N, M = 8, 16
    d_row, d_col = 16, 16            # two embedding streams -> embedding_dim = 32
    units = [32, 16, 4]

    row_emb = jax.random.normal(k1, (N, M, d_row), jnp.float32)
    col_emb = jax.random.normal(k2, (N, M, d_col), jnp.float32)
    mask = (jax.random.uniform(k3, (N, M, 1)) > 0.2).astype(jnp.float32)

    params = init_decoder(k4, d_row + d_col, units)

    out = jax.jit(decoder_forward)(params, [row_emb, col_emb], mask)
    jax.block_until_ready(out)
    assert out.shape == (N, M, units[-1])

    # Tight check against a reference with matching bf16-operand matmul numerics.
    ref = decoder_ref(params, [row_emb, col_emb], mask, mxu_dtype=jnp.bfloat16)
    err = float(jnp.max(jnp.abs(out - ref)))
    assert jnp.allclose(out, ref, rtol=2e-3, atol=2e-3), err

    print("KERNEL_OK")
</pallas_src>

<mosaic_0001>
module attributes {stable_mosaic.version = 11 : i64} {
  func.func @_decoder_kernel(%arg0: i32, %arg1: memref<8x16x128xf32, #tpu.memory_space<vmem>>, %arg2: memref<8x16x1xf32, #tpu.memory_space<vmem>>, %arg3: memref<8x1xf32, #tpu.memory_space<vmem>>, %arg4: memref<16x1xf32, #tpu.memory_space<vmem>>, %arg5: memref<1x1xf32, #tpu.memory_space<vmem>>, %arg6: memref<1x4x128x128xbf16, #tpu.memory_space<vmem>>, %arg7: memref<1x1x128xf32, #tpu.memory_space<vmem>>, %arg8: memref<8x16x128xf32, #tpu.memory_space<vmem>>) attributes {dimension_semantics = [#tpu.dimension_semantics<arbitrary>], iteration_bounds = array<i64: 3>, scalar_prefetch = 0 : i64, scratch_operands = 0 : i64, tpu.core_type = #tpu.core_type<tc>, window_params = [{pipeline_mode = #tpu.pipeline_mode<synchronous>, transform_indices = @transform_0, window_bounds = array<i64: 8, 16, 128>}, {pipeline_mode = #tpu.pipeline_mode<synchronous>, transform_indices = @transform_1, window_bounds = array<i64: 8, 16, 1>}, {pipeline_mode = #tpu.pipeline_mode<synchronous>, transform_indices = @transform_2, window_bounds = array<i64: 8, 1>}, {pipeline_mode = #tpu.pipeline_mode<synchronous>, transform_indices = @transform_3, window_bounds = array<i64: 16, 1>}, {pipeline_mode = #tpu.pipeline_mode<synchronous>, transform_indices = @transform_4, window_bounds = array<i64: 1, 1>}, {transform_indices = @transform_5, window_bounds = array<i64: 1, 4, 128, 128>}, {transform_indices = @transform_6, window_bounds = array<i64: 1, 1, 128>}, {pipeline_mode = #tpu.pipeline_mode<synchronous>, transform_indices = @transform_7, window_bounds = array<i64: 8, 16, 128>}]} {
    %c0_i32 = arith.constant 0 : i32
    %0 = arith.cmpi eq, %arg0, %c0_i32 : i32
    %1 = arith.extui %0 : i1 to i32
    %c0_i32_0 = arith.constant 0 : i32
    %2 = arith.cmpi ne, %1, %c0_i32_0 : i32
    scf.if %2 {
      %c0_37 = arith.constant 0 : index
      %c0_38 = arith.constant 0 : index
      %c0_39 = arith.constant 0 : index
      %56 = vector.load %arg1[%c0_37, %c0_38, %c0_39] : memref<8x16x128xf32, #tpu.memory_space<vmem>>, vector<8x16x128xf32>
      %c0_40 = arith.constant 0 : index
      %c0_41 = arith.constant 0 : index
      %c0_42 = arith.constant 0 : index
      %57 = vector.load %arg8[%c0_40, %c0_41, %c0_42] : memref<8x16x128xf32, #tpu.memory_space<vmem>>, vector<8x16x128xf32>
      tpu.vector_store %arg8[%c0_40, %c0_41, %c0_42], %56 {strides = array<i32>} : memref<8x16x128xf32, #tpu.memory_space<vmem>>, vector<8x16x128xf32>,
    } else {
    }
    %c0 = arith.constant 0 : index
    %c0_1 = arith.constant 0 : index
    %c0_2 = arith.constant 0 : index
    %3 = vector.load %arg8[%c0, %c0_1, %c0_2] : memref<8x16x128xf32, #tpu.memory_space<vmem>>, vector<8x16x128xf32>
    %c0_3 = arith.constant 0 : index
    %c0_4 = arith.constant 0 : index
    %c0_5 = arith.constant 0 : index
    %4 = vector.load %arg2[%c0_3, %c0_4, %c0_5] : memref<8x16x1xf32, #tpu.memory_space<vmem>>, vector<8x16x1xf32>
    %5 = vector.broadcast %4 : vector<8x16x1xf32> to vector<8x16x128xf32>
    %6 = arith.mulf %3, %5 : vector<8x16x128xf32>
    %cst = arith.constant dense<0.000000e+00> : vector<8x128xf32>
    %7 = vector.multi_reduction <add>, %6, %cst [1] : vector<8x16x128xf32> to vector<8x128xf32>
    %cst_6 = arith.constant dense<0.000000e+00> : vector<16x128xf32>
    %8 = vector.multi_reduction <add>, %6, %cst_6 [0] : vector<8x16x128xf32> to vector<16x128xf32>
    %cst_7 = arith.constant dense<0.000000e+00> : vector<128xf32>
    %9 = vector.multi_reduction <add>, %8, %cst_7 [0] : vector<16x128xf32> to vector<128xf32>
    %10 = vector.shape_cast %9 : vector<128xf32> to vector<1x128xf32>
    %c0_8 = arith.constant 0 : index
    %c0_9 = arith.constant 0 : index
    %11 = vector.load %arg3[%c0_8, %c0_9] : memref<8x1xf32, #tpu.memory_space<vmem>>, vector<8x1xf32>
    %12 = vector.broadcast %11 : vector<8x1xf32> to vector<8x128xf32>
    %13 = arith.mulf %7, %12 : vector<8x128xf32>
    %c0_10 = arith.constant 0 : index
    %c0_11 = arith.constant 0 : index
    %14 = vector.load %arg4[%c0_10, %c0_11] : memref<16x1xf32, #tpu.memory_space<vmem>>, vector<16x1xf32>
    %15 = vector.broadcast %14 : vector<16x1xf32> to vector<16x128xf32>
    %16 = arith.mulf %8, %15 : vector<16x128xf32>
    %c0_12 = arith.constant 0 : index
    %c0_13 = arith.constant 0 : index
    %17 = vector.load %arg5[%c0_12, %c0_13] : memref<1x1xf32, #tpu.memory_space<vmem>>, vector<1x1xf32>
    %18 = vector.broadcast %17 : vector<1x1xf32> to vector<1x128xf32>
    %19 = arith.mulf %10, %18 : vector<1x128xf32>
    %c0_14 = arith.constant 0 : index
    %c0_15 = arith.constant 0 : index
    %c0_16 = arith.constant 0 : index
    %c0_17 = arith.constant 0 : index
    %20 = vector.load %arg6[%c0_14, %c0_15, %c0_16, %c0_17] : memref<1x4x128x128xbf16, #tpu.memory_space<vmem>>, vector<1x1x128x128xbf16>
    %21 = vector.shape_cast %20 : vector<1x1x128x128xbf16> to vector<128x128xbf16>
    %c0_18 = arith.constant 0 : index
    %c1 = arith.constant 1 : index
    %c0_19 = arith.constant 0 : index
    %c0_20 = arith.constant 0 : index
    %22 = vector.load %arg6[%c0_18, %c1, %c0_19, %c0_20] : memref<1x4x128x128xbf16, #tpu.memory_space<vmem>>, vector<1x1x128x128xbf16>
    %23 = vector.shape_cast %22 : vector<1x1x128x128xbf16> to vector<128x128xbf16>
    %c0_21 = arith.constant 0 : index
    %c2 = arith.constant 2 : index
    %c0_22 = arith.constant 0 : index
    %c0_23 = arith.constant 0 : index
    %24 = vector.load %arg6[%c0_21, %c2, %c0_22, %c0_23] : memref<1x4x128x128xbf16, #tpu.memory_space<vmem>>, vector<1x1x128x128xbf16>
    %25 = vector.shape_cast %24 : vector<1x1x128x128xbf16> to vector<128x128xbf16>
    %c0_24 = arith.constant 0 : index
    %c3 = arith.constant 3 : index
    %c0_25 = arith.constant 0 : index
    %c0_26 = arith.constant 0 : index
    %26 = vector.load %arg6[%c0_24, %c3, %c0_25, %c0_26] : memref<1x4x128x128xbf16, #tpu.memory_space<vmem>>, vector<1x1x128x128xbf16>
    %27 = vector.shape_cast %26 : vector<1x1x128x128xbf16> to vector<128x128xbf16>
    %c0_27 = arith.constant 0 : index
    %c0_28 = arith.constant 0 : index
    %c0_29 = arith.constant 0 : index
    %28 = vector.load %arg7[%c0_27, %c0_28, %c0_29] : memref<1x1x128xf32, #tpu.memory_space<vmem>>, vector<1x1x128xf32>
    %29 = vector.shape_cast %28 : vector<1x1x128xf32> to vector<1x128xf32>
    %30 = vector.shape_cast %3 : vector<8x16x128xf32> to vector<128x128xf32>
    %31 = arith.truncf %30 : vector<128x128xf32> to vector<128x128xbf16>
    %cst_30 = arith.constant dense<0.000000e+00> : vector<128x128xf32>
    %32 = tpu.matmul %31, %21, %cst_30 {dimension_numbers = #tpu.dot_dimension_numbers<[1], [0], [0], [1], [0, 0, 1, 1], [], []>} : vector<128x128xbf16>, vector<128x128xbf16>, vector<128x128xf32> -> vector<128x128xf32>
    %33 = vector.shape_cast %32 : vector<128x128xf32> to vector<8x16x128xf32>
    %34 = arith.truncf %13 : vector<8x128xf32> to vector<8x128xbf16>
    %cst_31 = arith.constant dense<0.000000e+00> : vector<8x128xf32>
    %35 = tpu.matmul %34, %23, %cst_31 {dimension_numbers = #tpu.dot_dimension_numbers<[1], [0], [0], [1], [0, 0, 1, 1], [], []>} : vector<8x128xbf16>, vector<128x128xbf16>, vector<8x128xf32> -> vector<8x128xf32>
    %36 = arith.truncf %16 : vector<16x128xf32> to vector<16x128xbf16>
    %cst_32 = arith.constant dense<0.000000e+00> : vector<16x128xf32>
    %37 = tpu.matmul %36, %25, %cst_32 {dimension_numbers = #tpu.dot_dimension_numbers<[1], [0], [0], [1], [0, 0, 1, 1], [], []>} : vector<16x128xbf16>, vector<128x128xbf16>, vector<16x128xf32> -> vector<16x128xf32>
    %38 = arith.truncf %19 : vector<1x128xf32> to vector<1x128xbf16>
    %cst_33 = arith.constant dense<0.000000e+00> : vector<1x128xf32>
    %39 = tpu.matmul %38, %27, %cst_33 {dimension_numbers = #tpu.dot_dimension_numbers<[1], [0], [0], [1], [0, 0, 1, 1], [], []>} : vector<1x128xbf16>, vector<128x128xbf16>, vector<1x128xf32> -> vector<1x128xf32>
    %40 = vector.shape_cast %35 : vector<8x128xf32> to vector<8x1x128xf32>
    %41 = vector.broadcast %40 : vector<8x1x128xf32> to vector<8x16x128xf32>
    %42 = arith.addf %33, %41 : vector<8x16x128xf32>
    %43 = vector.shape_cast %37 : vector<16x128xf32> to vector<1x16x128xf32>
    %44 = vector.broadcast %43 : vector<1x16x128xf32> to vector<8x16x128xf32>
    %45 = arith.addf %42, %44 : vector<8x16x128xf32>
    %46 = arith.addf %39, %29 : vector<1x128xf32>
    %47 = vector.shape_cast %46 : vector<1x128xf32> to vector<1x1x128xf32>
    %48 = vector.broadcast %47 : vector<1x1x128xf32> to vector<8x16x128xf32>
    %49 = arith.addf %45, %48 : vector<8x16x128xf32>
    %c2_i32 = arith.constant 2 : i32
    %50 = arith.cmpi slt, %arg0, %c2_i32 : i32
    %51 = arith.extui %50 : i1 to i32
    %c0_i32_34 = arith.constant 0 : i32
    %52 = arith.cmpi ne, %51, %c0_i32_34 : i32
    scf.if %52 {
      %cst_37 = arith.constant 0.000000e+00 : f32
      %56 = vector.broadcast %cst_37 : f32 to vector<8x16x128xf32>
      %57 = arith.maximumf %49, %56 : vector<8x16x128xf32>
      %58 = vector.broadcast %4 : vector<8x16x1xf32> to vector<8x16x128xf32>
      %59 = arith.mulf %57, %58 : vector<8x16x128xf32>
      %c0_38 = arith.constant 0 : index
      %c0_39 = arith.constant 0 : index
      %c0_40 = arith.constant 0 : index
      %60 = vector.load %arg8[%c0_38, %c0_39, %c0_40] : memref<8x16x128xf32, #tpu.memory_space<vmem>>, vector<8x16x128xf32>
      tpu.vector_store %arg8[%c0_38, %c0_39, %c0_40], %59 {strides = array<i32>} : memref<8x16x128xf32, #tpu.memory_space<vmem>>, vector<8x16x128xf32>,
    } else {
    }
    %c2_i32_35 = arith.constant 2 : i32
    %53 = arith.cmpi eq, %arg0, %c2_i32_35 : i32
    %54 = arith.extui %53 : i1 to i32
    %c0_i32_36 = arith.constant 0 : i32
    %55 = arith.cmpi ne, %54, %c0_i32_36 : i32
    scf.if %55 {
      %c0_37 = arith.constant 0 : index
      %c0_38 = arith.constant 0 : index
      %c0_39 = arith.constant 0 : index
      %56 = vector.load %arg8[%c0_37, %c0_38, %c0_39] : memref<8x16x128xf32, #tpu.memory_space<vmem>>, vector<8x16x128xf32>
      tpu.vector_store %arg8[%c0_37, %c0_38, %c0_39], %49 {strides = array<i32>} : memref<8x16x128xf32, #tpu.memory_space<vmem>>, vector<8x16x128xf32>,
    } else {
    }
    return
  }
  func.func @transform_0(%arg0: i32) -> (i32, i32, i32) {
    %c0_i32 = arith.constant 0 : i32
    %c0_i32_0 = arith.constant 0 : i32
    %c0_i32_1 = arith.constant 0 : i32
    %c0_i32_2 = arith.constant 0 : i32
    return %c0_i32, %c0_i32_0, %c0_i32_1 : i32, i32, i32
  }
  func.func @transform_1(%arg0: i32) -> (i32, i32, i32) {
    %c0_i32 = arith.constant 0 : i32
    %c0_i32_0 = arith.constant 0 : i32
    %c0_i32_1 = arith.constant 0 : i32
    %c0_i32_2 = arith.constant 0 : i32
    return %c0_i32, %c0_i32_0, %c0_i32_1 : i32, i32, i32
  }
  func.func @transform_2(%arg0: i32) -> (i32, i32) {
    %c0_i32 = arith.constant 0 : i32
    %c0_i32_0 = arith.constant 0 : i32
    %c0_i32_1 = arith.constant 0 : i32
    return %c0_i32, %c0_i32_0 : i32, i32
  }
  func.func @transform_3(%arg0: i32) -> (i32, i32) {
    %c0_i32 = arith.constant 0 : i32
    %c0_i32_0 = arith.constant 0 : i32
    %c0_i32_1 = arith.constant 0 : i32
    return %c0_i32, %c0_i32_0 : i32, i32
  }
  func.func @transform_4(%arg0: i32) -> (i32, i32) {
    %c0_i32 = arith.constant 0 : i32
    %c0_i32_0 = arith.constant 0 : i32
    %c0_i32_1 = arith.constant 0 : i32
    return %c0_i32, %c0_i32_0 : i32, i32
  }
  func.func @transform_5(%arg0: i32) -> (i32, i32, i32, i32) {
    %c0_i32 = arith.constant 0 : i32
    %c0_i32_0 = arith.constant 0 : i32
    %c0_i32_1 = arith.constant 0 : i32
    %c0_i32_2 = arith.constant 0 : i32
    return %arg0, %c0_i32, %c0_i32_0, %c0_i32_1 : i32, i32, i32, i32
  }
  func.func @transform_6(%arg0: i32) -> (i32, i32, i32) {
    %c0_i32 = arith.constant 0 : i32
    %c0_i32_0 = arith.constant 0 : i32
    %c0_i32_1 = arith.constant 0 : i32
    return %arg0, %c0_i32, %c0_i32_0 : i32, i32, i32
  }
  func.func @transform_7(%arg0: i32) -> (i32, i32, i32) {
    %c0_i32 = arith.constant 0 : i32
    %c0_i32_0 = arith.constant 0 : i32
    %c0_i32_1 = arith.constant 0 : i32
    %c0_i32_2 = arith.constant 0 : i32
    return %c0_i32, %c0_i32_0, %c0_i32_1 : i32, i32, i32
  }
}

</mosaic_0001>

<llo_original>
// kernel: decoder_forward.1
$region0: #{decoder_forward.1}
  #allocation0 [shape = 'u32[]', space=smem, size = 0x4, offset = 0x4, fixed_abs, tag = 'smem constant byte address 0x4 - core index']
  #allocation1 [shape = 'u32[144,128]{1,0:T(1,128)}', space=vmem, size = 0x12000, scoped, tag = 'internal scratch']
  #allocation2 [shape = 'f32[1,1]{1,0:T(1,128)S(1)}', space=vmem, size = 0x200, scoped, tag = 'scoped memory for decoder_forward.1']
  %s0 = inlined_call_operand.vmem [shape: f32[8,16,128], index: 0, kind: input, shape index: {}, may-alias: {0,7}]
  %s1 = inlined_call_operand.vmem [shape: f32[8,16,1], index: 1, kind: input, shape index: {}]
  %s2 = inlined_call_operand.vmem [shape: f32[8,1], index: 2, kind: input, shape index: {}]
  %s3 = inlined_call_operand.vmem [shape: f32[16,1], index: 3, kind: input, shape index: {}]
  %s4 = inlined_call_operand.<no memory space> [shape: f32[1,1], index: 4, kind: input, shape index: {}]
  %s5 = inlined_call_operand.vmem [shape: bf16[3,4,128,128], index: 5, kind: input, shape index: {}]
  %s6 = inlined_call_operand.vmem [shape: f32[3,1,128], index: 6, kind: input, shape index: {}]
  %s7 = inlined_call_operand.vmem [shape: f32[8,16,128], index: 7, kind: output, shape index: {}, may-alias: {0,7}]
  %s8 = sld [smem:[#allocation0]]
  $region73: #{decoder_forward.1} parent=0
    _
  %s10 = ssub.s32 1, %s8
  %s11 = scalar_select 0, %s10, %s8
  %v12 = vstv %s4
  %13 = vst [vmem:[#allocation2] sm:$0x1] %v12
  loop: start=0, step=1, limit=5
  $region2: #{decoder_forward.1} parent=0 // loop_pre_header
    _
  $region3: #{decoder_forward.1} parent=0 // loop_header
    %s15 = sphi 0, %s19
    %p16 = scmp.ge.s32.totalorder %s15, 5
    %s23 = sphi 0, %s23
    %s25 = sphi 0, %s23
    %s26 = sphi 0, %s25
    %s40 = sphi 0, %s26
    %s44 = sphi 0, %s44
    %s46 = sphi 0, %s44
    %s47 = sphi 0, %s46
    %s61 = sphi 0, %s47
    %s65 = sphi 0, %s65
    %s67 = sphi 0, %s65
    %s68 = sphi 0, %s67
    %s82 = sphi 0, %s68
    %s86 = sphi 0, %s86
    %s88 = sphi 0, %s86
    %s89 = sphi 0, %s88
    %s103 = sphi 0, %s89
    %s107 = sphi 0, %s107
    %s109 = sphi 0, %s107
    %s110 = sphi 0, %s109
    %s124 = sphi 0, %s110
    %s130 = sphi 0, %s132
    %s133 = sphi 0, %s130
    %s134 = sphi 0, %s133
    %s150 = sphi 0, %s134
    %s156 = sphi 0, %s158
    %s159 = sphi 0, %s156
    %s160 = sphi 0, %s159
    %s176 = sphi 0, %s160
    %s180 = sphi 0, %s180
    %s182 = sphi 0, %s180
    %s183 = sphi 0, %s182
    %s197 = sphi 0, %s183
  $region4: #{decoder_forward.1} parent=0 // loop_header_branch
    %18 = sbr.rel (%p16) target = $region8
  $region5: #{decoder_forward.1} parent=0 // loop_body
    %s20 = ssub.s32 %s15, 1
    %s21 = ssub.s32 %s15, 2
    %s22 = sadd.s32 %s15, 1
    %s24 = sadd.s32 %s23, 1
    %p27 = scmp.eq.s32.totalorder %s15, 2
    %p28 = scmp.ne.s32.totalorder %s23, %s25
    %p29 = scmp.eq.s32.totalorder %s15, 0
    %p30 = por %p28, %p29
    %p31 = scmp.ne.s32.totalorder %s23, %s25
    %p32 = scmp.eq.s32.totalorder %s20, 2
    %p33 = por %p31, %p32
    %p34 = scmp.ne.s32.totalorder %s25, %s26
    %p35 = scmp.eq.s32.totalorder %s20, 0
    %p36 = por %p34, %p35
    %p37 = scmp.ne.s32.totalorder %s25, %s26
    %p38 = scmp.eq.s32.totalorder %s21, 2
    %p39 = por %p37, %p38
    %p41 = scmp.ne.s32.totalorder %s26, %s40
    %p42 = scmp.eq.s32.totalorder %s21, 0
    %p43 = por %p41, %p42
    %s45 = sadd.s32 %s44, 1
    %p48 = scmp.eq.s32.totalorder %s15, 2
    %p49 = scmp.ne.s32.totalorder %s44, %s46
    %p50 = scmp.eq.s32.totalorder %s15, 0
    %p51 = por %p49, %p50
    %p52 = scmp.ne.s32.totalorder %s44, %s46
    %p53 = scmp.eq.s32.totalorder %s20, 2
    %p54 = por %p52, %p53
    %p55 = scmp.ne.s32.totalorder %s46, %s47
    %p56 = scmp.eq.s32.totalorder %s20, 0
    %p57 = por %p55, %p56
    %p58 = scmp.ne.s32.totalorder %s46, %s47
    %p59 = scmp.eq.s32.totalorder %s21, 2
    %p60 = por %p58, %p59
    %p62 = scmp.ne.s32.totalorder %s47, %s61
    %p63 = scmp.eq.s32.totalorder %s21, 0
    %p64 = por %p62, %p63
    %s66 = sadd.s32 %s65, 1
    %p69 = scmp.eq.s32.totalorder %s15, 2
    %p70 = scmp.ne.s32.totalorder %s65, %s67
    %p71 = scmp.eq.s32.totalorder %s15, 0
    %p72 = por %p70, %p71
    %p73 = scmp.ne.s32.totalorder %s65, %s67
    %p74 = scmp.eq.s32.totalorder %s20, 2
    %p75 = por %p73, %p74
    %p76 = scmp.ne.s32.totalorder %s67, %s68
    %p77 = scmp.eq.s32.totalorder %s20, 0
    %p78 = por %p76, %p77
    %p79 = scmp.ne.s32.totalorder %s67, %s68
    %p80 = scmp.eq.s32.totalorder %s21, 2
    %p81 = por %p79, %p80
    %p83 = scmp.ne.s32.totalorder %s68, %s82
    %p84 = scmp.eq.s32.totalorder %s21, 0
    %p85 = por %p83, %p84
    %s87 = sadd.s32 %s86, 1
    %p90 = scmp.eq.s32.totalorder %s15, 2
    %p91 = scmp.ne.s32.totalorder %s86, %s88
    %p92 = scmp.eq.s32.totalorder %s15, 0
    %p93 = por %p91, %p92
    %p94 = scmp.ne.s32.totalorder %s86, %s88
    %p95 = scmp.eq.s32.totalorder %s20, 2
    %p96 = por %p94, %p95
    %p97 = scmp.ne.s32.totalorder %s88, %s89
    %p98 = scmp.eq.s32.totalorder %s20, 0
    %p99 = por %p97, %p98
    %p100 = scmp.ne.s32.totalorder %s88, %s89
    %p101 = scmp.eq.s32.totalorder %s21, 2
    %p102 = por %p100, %p101
    %p104 = scmp.ne.s32.totalorder %s89, %s103
    %p105 = scmp.eq.s32.totalorder %s21, 0
    %p106 = por %p104, %p105
    %s108 = sadd.s32 %s107, 1
    %p111 = scmp.eq.s32.totalorder %s15, 2
    %p112 = scmp.ne.s32.totalorder %s107, %s109
    %p113 = scmp.eq.s32.totalorder %s15, 0
    %p114 = por %p112, %p113
    %p115 = scmp.ne.s32.totalorder %s107, %s109
    %p116 = scmp.eq.s32.totalorder %s20, 2
    %p117 = por %p115, %p116
    %p118 = scmp.ne.s32.totalorder %s109, %s110
    %p119 = scmp.eq.s32.totalorder %s20, 0
    %p120 = por %p118, %p119
    %p121 = scmp.ne.s32.totalorder %s109, %s110
    %p122 = scmp.eq.s32.totalorder %s21, 2
    %p123 = por %p121, %p122
    %p125 = scmp.ne.s32.totalorder %s110, %s124
    %p126 = scmp.eq.s32.totalorder %s21, 0
    %p127 = por %p125, %p126
    %s128 = ssub.s32 %s15, %s22
    %p129 = scmp.eq.s32.totalorder %s128, 0
    %s131 = sadd.s32 %s130, 1
    %s132 = scalar_select %p129, %s130, %s131
    %p135 = pneg %p129
    %p136 = scmp.eq.s32.totalorder %s15, 2
    %p137 = por %p135, %p136
    %p138 = scmp.ne.s32.totalorder %s130, %s133
    %p139 = scmp.eq.s32.totalorder %s15, 0
    %p140 = por %p138, %p139
    %p141 = scmp.ne.s32.totalorder %s130, %s133
    %p142 = scmp.eq.s32.totalorder %s20, 2
    %p143 = por %p141, %p142
    %p144 = scmp.ne.s32.totalorder %s133, %s134
    %p145 = scmp.eq.s32.totalorder %s20, 0
    %p146 = por %p144, %p145
    %p147 = scmp.ne.s32.totalorder %s133, %s134
    %p148 = scmp.eq.s32.totalorder %s21, 2
    %p149 = por %p147, %p148
    %p151 = scmp.ne.s32.totalorder %s134, %s150
    %p152 = scmp.eq.s32.totalorder %s21, 0
    %p153 = por %p151, %p152
    %s154 = ssub.s32 %s15, %s22
    %p155 = scmp.eq.s32.totalorder %s154, 0
    %s157 = sadd.s32 %s156, 1
    %s158 = scalar_select %p155, %s156, %s157
    %p161 = pneg %p155
    %p162 = scmp.eq.s32.totalorder %s15, 2
    %p163 = por %p161, %p162
    %p164 = scmp.ne.s32.totalorder %s156, %s159
    %p165 = scmp.eq.s32.totalorder %s15, 0
    %p166 = por %p164, %p165
    %p167 = scmp.ne.s32.totalorder %s156, %s159
    %p168 = scmp.eq.s32.totalorder %s20, 2
    %p169 = por %p167, %p168
    %p170 = scmp.ne.s32.totalorder %s159, %s160
    %p171 = scmp.eq.s32.totalorder %s20, 0
    %p172 = por %p170, %p171
    %p173 = scmp.ne.s32.totalorder %s159, %s160
    %p174 = scmp.eq.s32.totalorder %s21, 2
    %p175 = por %p173, %p174
    %p177 = scmp.ne.s32.totalorder %s160, %s176
    %p178 = scmp.eq.s32.totalorder %s21, 0
    %p179 = por %p177, %p178
    %s181 = sadd.s32 %s180, 1
    %p184 = scmp.eq.s32.totalorder %s15, 2
    %p185 = scmp.ne.s32.totalorder %s180, %s182
    %p186 = scmp.eq.s32.totalorder %s15, 0
    %p187 = por %p185, %p186
    %p188 = scmp.ne.s32.totalorder %s180, %s182
    %p189 = scmp.eq.s32.totalorder %s20, 2
    %p190 = por %p188, %p189
    %p191 = scmp.ne.s32.totalorder %s182, %s183
    %p192 = scmp.eq.s32.totalorder %s20, 0
    %p193 = por %p191, %p192
    %p194 = scmp.ne.s32.totalorder %s182, %s183
    %p195 = scmp.eq.s32.totalorder %s21, 2
    %p196 = por %p194, %p195
    %p198 = scmp.ne.s32.totalorder %s183, %s197
    %p199 = scmp.eq.s32.totalorder %s21, 0
    %p200 = por %p198, %p199
    %p201 = scmp.le.s32.totalorder 1, %s15
    %p202 = scmp.lt.s32.totalorder %s15, 4
    %p203 = pnand %p201, %p202
    %p204 = pneg %p203
    // Predicated region
    $region9: #{decoder_forward.1} parent=5 // pred_check
      _
    $region10: #{decoder_forward.1} parent=5 // pred_check_branch
      %206 = sbr.rel (%p203) target = $region12
    $region11: #{decoder_forward.1} parent=5 // pred_region
      %s207 = ssub.s32 %s15, 1
      // Predicated region
      $region13: #{decoder_forward.1} parent=11 // pred_check
        %p208 = pneg %p36
      $region14: #{decoder_forward.1} parent=11 // pred_check_branch
        %210 = sbr.rel (%p208) target = $region16
      $region15: #{decoder_forward.1} parent=11 // pred_region
        _
      $region16: #{decoder_forward.1} parent=11 // pred_fallthru
        _
      // Predicated region
      $region17: #{decoder_forward.1} parent=11 // pred_check
        %p211 = pneg %p57
      $region18: #{decoder_forward.1} parent=11 // pred_check_branch
        %213 = sbr.rel (%p211) target = $region20
      $region19: #{decoder_forward.1} parent=11 // pred_region
        _
      $region20: #{decoder_forward.1} parent=11 // pred_fallthru
        _
      // Predicated region
      $region21: #{decoder_forward.1} parent=11 // pred_check
        %p214 = pneg %p78
      $region22: #{decoder_forward.1} parent=11 // pred_check_branch
        %216 = sbr.rel (%p214) target = $region24
      $region23: #{decoder_forward.1} parent=11 // pred_region
        _
      $region24: #{decoder_forward.1} parent=11 // pred_fallthru
        _
      // Predicated region
      $region25: #{decoder_forward.1} parent=11 // pred_check
        %p217 = pneg %p99
      $region26: #{decoder_forward.1} parent=11 // pred_check_branch
        %219 = sbr.rel (%p217) target = $region28
      $region27: #{decoder_forward.1} parent=11 // pred_region
        _
      $region28: #{decoder_forward.1} parent=11 // pred_fallthru
        _
      // Predicated region
      $region29: #{decoder_forward.1} parent=11 // pred_check
        %p220 = pneg %p120
      $region30: #{decoder_forward.1} parent=11 // pred_check_branch
        %222 = sbr.rel (%p220) target = $region32
      $region31: #{decoder_forward.1} parent=11 // pred_region
        _
      $region32: #{decoder_forward.1} parent=11 // pred_fallthru
        _
    $region12: #{decoder_forward.1} parent=5 // pred_fallthru
      _
    %p223 = scmp.lt.s32.totalorder %s15, 3
    // Predicated region
    $region33: #{decoder_forward.1} parent=5 // pred_check
      %p224 = pneg %p223
    $region34: #{decoder_forward.1} parent=5 // pred_check_branch
      %226 = sbr.rel (%p224) target = $region36
    $region35: #{decoder_forward.1} parent=5 // pred_region
      // Predicated region
      $region37: #{decoder_forward.1} parent=35 // pred_check
        %p227 = pneg %p140
      $region38: #{decoder_forward.1} parent=35 // pred_check_branch
        %229 = sbr.rel (%p227) target = $region40
      $region39: #{decoder_forward.1} parent=35 // pred_region
        %p230 = scmp.lt.s32.totalorder %s15, 2
        %s231 = scalar_select %p230, %s15, 2
        %s232 = smul.addr %s231, 64
        %s233 = smul.addr %s232, 4
        %s234 = scalar_lea.vmem %s5, %s233
      $region40: #{decoder_forward.1} parent=35 // pred_fallthru
        _
      // Predicated region
      $region41: #{decoder_forward.1} parent=35 // pred_check
        %p235 = pneg %p166
      $region42: #{decoder_forward.1} parent=35 // pred_check_branch
        %237 = sbr.rel (%p235) target = $region44
      $region43: #{decoder_forward.1} parent=35 // pred_region
        %p238 = scmp.lt.s32.totalorder %s15, 2
        %s239 = scalar_select %p238, %s15, 2
        %s240 = scalar_lea.vmem %s6, %s239
      $region44: #{decoder_forward.1} parent=35 // pred_fallthru
        _
    $region36: #{decoder_forward.1} parent=5 // pred_fallthru
      _
    %p241 = scmp.le.s32.totalorder 1, %s15
    %p242 = scmp.lt.s32.totalorder %s15, 4
    %p243 = pnand %p241, %p242
    %p244 = pneg %p243
    // Predicated region
    $region45: #{decoder_forward.1} parent=5 // pred_check
      _
    $region46: #{decoder_forward.1} parent=5 // pred_check_branch
      %246 = sbr.rel (%p243) target = $region48
    $region47: #{decoder_forward.1} parent=5 // pred_region
      %s247 = ssub.s32 %s15, 1
      %p248 = pneg %p36
      %p249 = pneg %p33
      %p250 = pneg %p57
      %p251 = pneg %p54
      %p252 = pneg %p78
      %p253 = pneg %p75
      %p254 = pneg %p99
      %p255 = pneg %p96
      %p256 = pneg %p120
      %p257 = pneg %p117
      %p258 = scmp.lt.s32.totalorder %s20, 2
      %s259 = scalar_select %p258, %s20, 2
      %s260 = smul.addr %s259, 64
      %s261 = smul.addr %s260, 4
      %s262 = scalar_lea.vmem %s5, %s261
      %p263 = pneg %p146
      %p264 = pneg %p143
      %p265 = scmp.lt.s32.totalorder %s20, 2
      %s266 = scalar_select %p265, %s20, 2
      %s267 = scalar_lea.vmem %s6, %s266
      %p268 = pneg %p172
      %p269 = pneg %p169
      %p270 = pneg %p193
      %p271 = pneg %p190
      %p272 = scmp.lt.s32.totalorder %s20, 2
      %s273 = scalar_select %p272, %s20, 2
      %s274 = smul.addr %s273, 64
      %s275 = smul.addr %s274, 4
      %s276 = scalar_lea.vmem %s5, %s275
      %p277 = scmp.lt.s32.totalorder %s20, 2
      %s278 = scalar_select %p277, %s20, 2
      %s279 = scalar_lea.vmem %s6, %s278
      %p281 = scmp.eq.s32.totalorder %s20, 0
      // Predicated region
      $region49: #{decoder_forward.1} parent=47 // pred_check
        %p282 = pneg %p281
      $region50: #{decoder_forward.1} parent=47 // pred_check_branch
        %284 = sbr.rel (%p282) target = $region52
      $region51: #{decoder_forward.1} parent=47 // pred_region
        %v285 = vld [vmem:[%s0] sm:$0xff]
        %v286 = vld [vmem:[%s0 + $0x8] sm:$0xff]
        %v287 = vld [vmem:[%s0 + $0x10] sm:$0xff]
        %v288 = vld [vmem:[%s0 + $0x18] sm:$0xff]
        %v289 = vld [vmem:[%s0 + $0x20] sm:$0xff]
        %v290 = vld [vmem:[%s0 + $0x28] sm:$0xff]
        %v291 = vld [vmem:[%s0 + $0x30] sm:$0xff]
        %v292 = vld [vmem:[%s0 + $0x38] sm:$0xff]
        %v293 = vld [vmem:[%s0 + $0x40] sm:$0xff]
        %v294 = vld [vmem:[%s0 + $0x48] sm:$0xff]
        %v295 = vld [vmem:[%s0 + $0x50] sm:$0xff]
        %v296 = vld [vmem:[%s0 + $0x58] sm:$0xff]
        %v297 = vld [vmem:[%s0 + $0x60] sm:$0xff]
        %v298 = vld [vmem:[%s0 + $0x68] sm:$0xff]
        %v299 = vld [vmem:[%s0 + $0x70] sm:$0xff]
        %v300 = vld [vmem:[%s0 + $0x78] sm:$0xff]
        %301 = vst [vmem:[%s7] sm:$0xff] %v285
        %302 = vst [vmem:[%s7 + $0x8] sm:$0xff] %v286
        %303 = vst [vmem:[%s7 + $0x10] sm:$0xff] %v287
        %304 = vst [vmem:[%s7 + $0x18] sm:$0xff] %v288
        %305 = vst [vmem:[%s7 + $0x20] sm:$0xff] %v289
        %306 = vst [vmem:[%s7 + $0x28] sm:$0xff] %v290
        %307 = vst [vmem:[%s7 + $0x30] sm:$0xff] %v291
        %308 = vst [vmem:[%s7 + $0x38] sm:$0xff] %v292
        %309 = vst [vmem:[%s7 + $0x40] sm:$0xff] %v293
        %310 = vst [vmem:[%s7 + $0x48] sm:$0xff] %v294
        %311 = vst [vmem:[%s7 + $0x50] sm:$0xff] %v295
        %312 = vst [vmem:[%s7 + $0x58] sm:$0xff] %v296
        %313 = vst [vmem:[%s7 + $0x60] sm:$0xff] %v297
        %314 = vst [vmem:[%s7 + $0x68] sm:$0xff] %v298
        %315 = vst [vmem:[%s7 + $0x70] sm:$0xff] %v299
        %316 = vst [vmem:[%s7 + $0x78] sm:$0xff] %v300
      $region52: #{decoder_forward.1} parent=47 // pred_fallthru
        _
      %v317 = vld [vmem:[%s7] sm:$0xff]
      %v318 = vld [vmem:[%s7 + $0x8] sm:$0xff]
      %v319 = vld [vmem:[%s7 + $0x10] sm:$0xff]
      %v320 = vld [vmem:[%s7 + $0x18] sm:$0xff]
      %v321 = vld [vmem:[%s7 + $0x20] sm:$0xff]
      %v322 = vld [vmem:[%s7 + $0x28] sm:$0xff]
      %v323 = vld [vmem:[%s7 + $0x30] sm:$0xff]
      %v324 = vld [vmem:[%s7 + $0x38] sm:$0xff]
      %v325 = vld [vmem:[%s7 + $0x40] sm:$0xff]
      %v326 = vld [vmem:[%s7 + $0x48] sm:$0xff]
      %v327 = vld [vmem:[%s7 + $0x50] sm:$0xff]
      %v328 = vld [vmem:[%s7 + $0x58] sm:$0xff]
      %v329 = vld [vmem:[%s7 + $0x60] sm:$0xff]
      %v330 = vld [vmem:[%s7 + $0x68] sm:$0xff]
      %v331 = vld [vmem:[%s7 + $0x70] sm:$0xff]
      %v332 = vld [vmem:[%s7 + $0x78] sm:$0xff]
      %v333 = vld [vmem:[%s1] sm:$0xff]
      %v334 = vld [vmem:[%s1 + $0x8] sm:$0xff]
      %v335 = vld [vmem:[%s1 + $0x10] sm:$0xff]
      %v336 = vld [vmem:[%s1 + $0x18] sm:$0xff]
      %v337 = vld [vmem:[%s1 + $0x20] sm:$0xff]
      %v338 = vld [vmem:[%s1 + $0x28] sm:$0xff]
      %v339 = vld [vmem:[%s1 + $0x30] sm:$0xff]
      %v340 = vld [vmem:[%s1 + $0x38] sm:$0xff]
      %v341 = vld [vmem:[%s1 + $0x40] sm:$0xff]
      %v342 = vld [vmem:[%s1 + $0x48] sm:$0xff]
      %v343 = vld [vmem:[%s1 + $0x50] sm:$0xff]
      %v344 = vld [vmem:[%s1 + $0x58] sm:$0xff]
      %v345 = vld [vmem:[%s1 + $0x60] sm:$0xff]
      %v346 = vld [vmem:[%s1 + $0x68] sm:$0xff]
      %v347 = vld [vmem:[%s1 + $0x70] sm:$0xff]
      %v348 = vld [vmem:[%s1 + $0x78] sm:$0xff]
      %350 = vset.pattern.permute.xlu0 0
      %351 = vperm.xlu0 %350, %v333
      %v352 = vpop.permute.xlu0 %351
      %355 = vset.pattern.permute.xlu0 0
      %356 = vperm.xlu0 %355, %v334
      %v357 = vpop.permute.xlu0 %356
      %360 = vset.pattern.permute.xlu0 0
      %361 = vperm.xlu0 %360, %v335
      %v362 = vpop.permute.xlu0 %361
      %365 = vset.pattern.permute.xlu0 0
      %366 = vperm.xlu0 %365, %v336
      %v367 = vpop.permute.xlu0 %366
      %370 = vset.pattern.permute.xlu0 0
      %371 = vperm.xlu0 %370, %v337
      %v372 = vpop.permute.xlu0 %371
      %375 = vset.pattern.permute.xlu0 0
      %376 = vperm.xlu0 %375, %v338
      %v377 = vpop.permute.xlu0 %376
      %380 = vset.pattern.permute.xlu0 0
      %381 = vperm.xlu0 %380, %v339
      %v382 = vpop.permute.xlu0 %381
      %385 = vset.pattern.permute.xlu0 0
      %386 = vperm.xlu0 %385, %v340
      %v387 = vpop.permute.xlu0 %386
      %390 = vset.pattern.permute.xlu0 0
      %391 = vperm.xlu0 %390, %v341
      %v392 = vpop.permute.xlu0 %391
      %395 = vset.pattern.permute.xlu0 0
      %396 = vperm.xlu0 %395, %v342
      %v397 = vpop.permute.xlu0 %396
      %400 = vset.pattern.permute.xlu0 0
      %401 = vperm.xlu0 %400, %v343
      %v402 = vpop.permute.xlu0 %401
      %405 = vset.pattern.permute.xlu0 0
      %406 = vperm.xlu0 %405, %v344
      %v407 = vpop.permute.xlu0 %406
      %410 = vset.pattern.permute.xlu0 0
      %411 = vperm.xlu0 %410, %v345
      %v412 = vpop.permute.xlu0 %411
      %415 = vset.pattern.permute.xlu0 0
      %416 = vperm.xlu0 %415, %v346
      %v417 = vpop.permute.xlu0 %416
      %420 = vset.pattern.permute.xlu0 0
      %421 = vperm.xlu0 %420, %v347
      %v422 = vpop.permute.xlu0 %421
      %425 = vset.pattern.permute.xlu0 0
      %426 = vperm.xlu0 %425, %v348
      %v427 = vpop.permute.xlu0 %426
      %v429 = vmul.f32 %v317, %v352
      %v430 = vmul.f32 %v318, %v357
      %v431 = vmul.f32 %v319, %v362
      %v432 = vmul.f32 %v320, %v367
      %v433 = vmul.f32 %v321, %v372
      %v434 = vmul.f32 %v322, %v377
      %v435 = vmul.f32 %v323, %v382
      %v436 = vmul.f32 %v324, %v387
      %v437 = vmul.f32 %v325, %v392
      %v438 = vmul.f32 %v326, %v397
      %v439 = vmul.f32 %v327, %v402
      %v440 = vmul.f32 %v328, %v407
      %v441 = vmul.f32 %v329, %v412
      %v442 = vmul.f32 %v330, %v417
      %v443 = vmul.f32 %v331, %v422
      %v444 = vmul.f32 %v332, %v427
      %v445 = vadd.f32 %v429, %v430
      %v446 = vrot.slane %v445, 4
      %v447 = vadd.f32 %v445, %v446
      %v448 = vrot.slane %v447, 2
      %v449 = vadd.f32 %v447, %v448
      %v450 = vrot.slane %v449, 1
      %v451 = vadd.f32 %v449, %v450
      %v452 = vadd.f32 %v431, %v432
      %v453 = vrot.slane %v452, 4
      %v454 = vadd.f32 %v452, %v453
      %v455 = vrot.slane %v454, 2
      %v456 = vadd.f32 %v454, %v455
      %v457 = vrot.slane %v456, 1
      %v458 = vadd.f32 %v456, %v457
      %v459 = vadd.f32 %v433, %v434
      %v460 = vrot.slane %v459, 4
      %v461 = vadd.f32 %v459, %v460
      %v462 = vrot.slane %v461, 2
      %v463 = vadd.f32 %v461, %v462
      %v464 = vrot.slane %v463, 1
      %v465 = vadd.f32 %v463, %v464
      %v466 = vadd.f32 %v435, %v436
      %v467 = vrot.slane %v466, 4
      %v468 = vadd.f32 %v466, %v467
      %v469 = vrot.slane %v468, 2
      %v470 = vadd.f32 %v468, %v469
      %v471 = vrot.slane %v470, 1
      %v472 = vadd.f32 %v470, %v471
      %v473 = vadd.f32 %v437, %v438
      %v474 = vrot.slane %v473, 4
      %v475 = vadd.f32 %v473, %v474
      %v476 = vrot.slane %v475, 2
      %v477 = vadd.f32 %v475, %v476
      %v478 = vrot.slane %v477, 1
      %v479 = vadd.f32 %v477, %v478
      %v480 = vadd.f32 %v439, %v440
      %v481 = vrot.slane %v480, 4
      %v482 = vadd.f32 %v480, %v481
      %v483 = vrot.slane %v482, 2
      %v484 = vadd.f32 %v482, %v483
      %v485 = vrot.slane %v484, 1
      %v486 = vadd.f32 %v484, %v485
      %v487 = vadd.f32 %v441, %v442
      %v488 = vrot.slane %v487, 4
      %v489 = vadd.f32 %v487, %v488
      %v490 = vrot.slane %v489, 2
      %v491 = vadd.f32 %v489, %v490
      %v492 = vrot.slane %v491, 1
      %v493 = vadd.f32 %v491, %v492
      %v494 = vadd.f32 %v443, %v444
      %v495 = vrot.slane %v494, 4
      %v496 = vadd.f32 %v494, %v495
      %v497 = vrot.slane %v496, 2
      %v498 = vadd.f32 %v496, %v497
      %v499 = vrot.slane %v498, 1
      %v500 = vadd.f32 %v498, %v499
      %v501 = vadd.f32 %v429, %v431
      %v502 = vadd.f32 %v501, %v433
      %v503 = vadd.f32 %v502, %v435
      %v504 = vadd.f32 %v503, %v437
      %v505 = vadd.f32 %v504, %v439
      %v506 = vadd.f32 %v505, %v441
      %v507 = vadd.f32 %v506, %v443
      %v508 = vadd.f32 %v430, %v432
      %v509 = vadd.f32 %v508, %v434
      %v510 = vadd.f32 %v509, %v436
      %v511 = vadd.f32 %v510, %v438
      %v512 = vadd.f32 %v511, %v440
      %v513 = vadd.f32 %v512, %v442
      %v514 = vadd.f32 %v513, %v444
      %v515 = vadd.f32 %v507, %v514
      %v516 = vrot.slane %v515, 4
      %v517 = vadd.f32 %v515, %v516
      %v518 = vrot.slane %v517, 2
      %v519 = vadd.f32 %v517, %v518
      %v520 = vrot.slane %v519, 1
      %v521 = vadd.f32 %v519, %v520
      %v522 = vld [vmem:[%s2] sm:$0xff]
      %524 = vset.pattern.permute.xlu0 0
      %525 = vperm.xlu0 %524, %v522
      %v526 = vpop.permute.xlu0 %525
      %v527 = vrot.slane %v526, 1
      %v528 = vrot.slane %v526, 2
      %v529 = vrot.slane %v526, 3
      %v530 = vrot.slane %v526, 4
      %v531 = vrot.slane %v526, 5
      %v532 = vrot.slane %v526, 6
      %v533 = vrot.slane %v526, 7
      %v542 = vmul.f32 %v451, %v526
      %v543 = vmul.f32 %v458, %v527
      %v544 = vmul.f32 %v465, %v528
      %v545 = vmul.f32 %v472, %v529
      %v546 = vmul.f32 %v479, %v530
      %v547 = vmul.f32 %v486, %v531
      %v548 = vmul.f32 %v493, %v532
      %v549 = vmul.f32 %v500, %v533
      %v550 = vld [vmem:[%s3] sm:$0xff]
      %v551 = vld [vmem:[%s3 + $0x8] sm:$0xff]
      %553 = vset.pattern.permute.xlu0 0
      %554 = vperm.xlu0 %553, %v550
      %v555 = vpop.permute.xlu0 %554
      %558 = vset.pattern.permute.xlu0 0
      %559 = vperm.xlu0 %558, %v551
      %v560 = vpop.permute.xlu0 %559
      %v562 = vmul.f32 %v507, %v555
      %v563 = vmul.f32 %v514, %v560
      %v564 = vld [vmem:[#allocation2] sm:$0x1]
      %566 = vset.pattern.permute.xlu0 0
      %567 = vperm.xlu0 %566, %v564
      %v568 = vpop.permute.xlu0 %567
      %v570 = vlaneseq
      %v571 = vshrl.u32 %v570, 7
      %v572 = vsub.s32 0, %v571
      %v573 = vrot.slane %v568, %v572
      %v574 = vmul.f32 %v521, %v573
      %v575 = vld [vmem:[%s276] sm:$0xf]
      %v576 = vld [vmem:[%s276 + $0x4] sm:$0xf]
      %v577 = vld [vmem:[%s276 + $0x8] sm:$0xf]
      %v578 = vld [vmem:[%s276 + $0xc] sm:$0xf]
      %v579 = vld [vmem:[%s276 + $0x10] sm:$0xf]
      %v580 = vld [vmem:[%s276 + $0x14] sm:$0xf]
      %v581 = vld [vmem:[%s276 + $0x18] sm:$0xf]
      %v582 = vld [vmem:[%s276 + $0x1c] sm:$0xf]
      %v583 = vld [vmem:[%s276 + $0x20] sm:$0xf]
      %v584 = vld [vmem:[%s276 + $0x24] sm:$0xf]
      %v585 = vld [vmem:[%s276 + $0x28] sm:$0xf]
      %v586 = vld [vmem:[%s276 + $0x2c] sm:$0xf]
      %v587 = vld [vmem:[%s276 + $0x30] sm:$0xf]
      %v588 = vld [vmem:[%s276 + $0x34] sm:$0xf]
      %v589 = vld [vmem:[%s276 + $0x38] sm:$0xf]
      %v590 = vld [vmem:[%s276 + $0x3c] sm:$0xf]
      %s591 = scalar_lea.vmem %s276, 64
      %v592 = vld [vmem:[%s591] sm:$0xf]
      %v593 = vld [vmem:[%s591 + $0x4] sm:$0xf]
      %v594 = vld [vmem:[%s591 + $0x8] sm:$0xf]
      %v595 = vld [vmem:[%s591 + $0xc] sm:$0xf]
      %v596 = vld [vmem:[%s591 + $0x10] sm:$0xf]
      %v597 = vld [vmem:[%s591 + $0x14] sm:$0xf]
      %v598 = vld [vmem:[%s591 + $0x18] sm:$0xf]
      %v599 = vld [vmem:[%s591 + $0x1c] sm:$0xf]
      %v600 = vld [vmem:[%s591 + $0x20] sm:$0xf]
      %v601 = vld [vmem:[%s591 + $0x24] sm:$0xf]
      %v602 = vld [vmem:[%s591 + $0x28] sm:$0xf]
      %v603 = vld [vmem:[%s591 + $0x2c] sm:$0xf]
      %v604 = vld [vmem:[%s591 + $0x30] sm:$0xf]
      %v605 = vld [vmem:[%s591 + $0x34] sm:$0xf]
      %v606 = vld [vmem:[%s591 + $0x38] sm:$0xf]
      %v607 = vld [vmem:[%s591 + $0x3c] sm:$0xf]
      %s608 = scalar_lea.vmem %s276, 128
      %v609 = vld [vmem:[%s608] sm:$0xf]
      %v610 = vld [vmem:[%s608 + $0x4] sm:$0xf]
      %v611 = vld [vmem:[%s608 + $0x8] sm:$0xf]
      %v612 = vld [vmem:[%s608 + $0xc] sm:$0xf]
      %v613 = vld [vmem:[%s608 + $0x10] sm:$0xf]
      %v614 = vld [vmem:[%s608 + $0x14] sm:$0xf]
      %v615 = vld [vmem:[%s608 + $0x18] sm:$0xf]
      %v616 = vld [vmem:[%s608 + $0x1c] sm:$0xf]
      %v617 = vld [vmem:[%s608 + $0x20] sm:$0xf]
      %v618 = vld [vmem:[%s608 + $0x24] sm:$0xf]
      %v619 = vld [vmem:[%s608 + $0x28] sm:$0xf]
      %v620 = vld [vmem:[%s608 + $0x2c] sm:$0xf]
      %v621 = vld [vmem:[%s608 + $0x30] sm:$0xf]
      %v622 = vld [vmem:[%s608 + $0x34] sm:$0xf]
      %v623 = vld [vmem:[%s608 + $0x38] sm:$0xf]
      %v624 = vld [vmem:[%s608 + $0x3c] sm:$0xf]
      %s625 = scalar_lea.vmem %s276, 192
      %v626 = vld [vmem:[%s625] sm:$0xf]
      %v627 = vld [vmem:[%s625 + $0x4] sm:$0xf]
      %v628 = vld [vmem:[%s625 + $0x8] sm:$0xf]
      %v629 = vld [vmem:[%s625 + $0xc] sm:$0xf]
      %v630 = vld [vmem:[%s625 + $0x10] sm:$0xf]
      %v631 = vld [vmem:[%s625 + $0x14] sm:$0xf]
      %v632 = vld [vmem:[%s625 + $0x18] sm:$0xf]
      %v633 = vld [vmem:[%s625 + $0x1c] sm:$0xf]
      %v634 = vld [vmem:[%s625 + $0x20] sm:$0xf]
      %v635 = vld [vmem:[%s625 + $0x24] sm:$0xf]
      %v636 = vld [vmem:[%s625 + $0x28] sm:$0xf]
      %v637 = vld [vmem:[%s625 + $0x2c] sm:$0xf]
      %v638 = vld [vmem:[%s625 + $0x30] sm:$0xf]
      %v639 = vld [vmem:[%s625 + $0x34] sm:$0xf]
      %v640 = vld [vmem:[%s625 + $0x38] sm:$0xf]
      %v641 = vld [vmem:[%s625 + $0x3c] sm:$0xf]
      %v642 = vld [vmem:[%s279] sm:$0x1]
      %v643 = vpack.c.bf16 %v318, %v317
      %v644 = vpack.c.bf16 %v320, %v319
      %v645 = vpack.c.bf16 %v322, %v321
      %v646 = vpack.c.bf16 %v324, %v323
      %v647 = vpack.c.bf16 %v326, %v325
      %v648 = vpack.c.bf16 %v328, %v327
      %v649 = vpack.c.bf16 %v330, %v329
      %v650 = vpack.c.bf16 %v332, %v331
      %v667 = vunpack.c.l.b16 %v575
      %v668 = vunpack.c.l.b16 %v576
      %v669 = vunpack.c.l.b16 %v577
      %v670 = vunpack.c.l.b16 %v578
      %v671 = vunpack.c.l.b16 %v579
      %v672 = vunpack.c.l.b16 %v580
      %v673 = vunpack.c.l.b16 %v581
      %v674 = vunpack.c.l.b16 %v582
      %v675 = vunpack.c.l.b16 %v583
      %v676 = vunpack.c.l.b16 %v584
      %v677 = vunpack.c.l.b16 %v585
      %v678 = vunpack.c.l.b16 %v586
      %v679 = vunpack.c.l.b16 %v587
      %v680 = vunpack.c.l.b16 %v588
      %v681 = vunpack.c.l.b16 %v589
      %v682 = vunpack.c.l.b16 %v590
      %v683 = vpack.c.b16 %v668, %v667
      %v684 = vpack.c.b16 %v670, %v669
      %v685 = vpack.c.b16 %v672, %v671
      %v686 = vpack.c.b16 %v674, %v673
      %v687 = vpack.c.b16 %v676, %v675
      %v688 = vpack.c.b16 %v678, %v677
      %v689 = vpack.c.b16 %v680, %v679
      %v690 = vpack.c.b16 %v682, %v681
      %699 = vmatprep.subr.bf16.mxu0 0
      %700 = vmatpush1.bf16.msra.mxu0 %v683
      %701 = vmatprep.subr.bf16.mxu0 0
      %702 = vmatpush1.bf16.msra.mxu0 %v684
      %703 = vmatprep.subr.bf16.mxu0 0
      %704 = vmatpush1.bf16.msra.mxu0 %v685
      %705 = vmatprep.subr.bf16.mxu0 0
      %706 = vmatpush1.bf16.msra.mxu0 %v686
      %707 = vmatprep.subr.bf16.mxu0 0
      %708 = vmatpush1.bf16.msra.mxu0 %v687
      %709 = vmatprep.subr.bf16.mxu0 0
      %710 = vmatpush1.bf16.msra.mxu0 %v688
      %711 = vmatprep.subr.bf16.mxu0 0
      %712 = vmatpush1.bf16.msra.mxu0 %v689
      %713 = vmatprep.subr.bf16.mxu0 0
      %714 = vmatpush1.bf16.msra.mxu0 %v690
      %715 = vmatprep.subr.bf16.mxu0 0
      %716 = vmatpush1.bf16.msra.mxu0 0
      %717 = vmatprep.subr.bf16.mxu0 0
      %718 = vmatpush1.bf16.msra.mxu0 0
      %719 = vmatprep.subr.bf16.mxu0 0
      %720 = vmatpush1.bf16.msra.mxu0 0
      %721 = vmatprep.subr.bf16.mxu0 0
      %722 = vmatpush1.bf16.msra.mxu0 0
      %723 = vmatprep.subr.bf16.mxu0 0
      %724 = vmatpush1.bf16.msra.mxu0 0
      %725 = vmatprep.subr.bf16.mxu0 0
      %726 = vmatpush1.bf16.msra.mxu0 0
      %727 = vmatprep.subr.bf16.mxu0 0
      %728 = vmatpush1.bf16.msra.mxu0 0
      %729 = vmatprep.subr.bf16.mxu0 0
      %730 = vmatpush1.bf16.msra.mxu0 0
      %731 = vmatprep.mubr.bf16.mxu0 0
      %732 = vmatmul.mubr.bf16.gmra.mrb[0].mxu0 %v643
      %v733 = vpop.f32.mrb[0].mxu0
      %v734 = vadd.f32 0.0, %v733
      %v735 = vpop.f32.mrb[0].mxu0
      %v736 = vpop.f32.mrb[0].mxu0
      %v737 = vadd.f32 0.0, %v736
      %v738 = vpop.f32.mrb[0].mxu0
      %739 = vmatprep.mubr.bf16.mxu0 0
      %740 = vmatmul.mubr.bf16.gmra.mrb[0].mxu0 %v644
      %v741 = vpop.f32.mrb[0].mxu0
      %v742 = vadd.f32 0.0, %v741
      %v743 = vpop.f32.mrb[0].mxu0
      %v744 = vpop.f32.mrb[0].mxu0
      %v745 = vadd.f32 0.0, %v744
      %v746 = vpop.f32.mrb[0].mxu0
      %747 = vmatprep.mubr.bf16.mxu0 0
      %748 = vmatmul.mubr.bf16.gmra.mrb[0].mxu0 %v645
      %v749 = vpop.f32.mrb[0].mxu0
      %v750 = vadd.f32 0.0, %v749
      %v751 = vpop.f32.mrb[0].mxu0
      %v752 = vpop.f32.mrb[0].mxu0
      %v753 = vadd.f32 0.0, %v752
      %v754 = vpop.f32.mrb[0].mxu0
      %755 = vmatprep.mubr.bf16.mxu0 0
      %756 = vmatmul.mubr.bf16.gmra.mrb[0].mxu0 %v646
      %v757 = vpop.f32.mrb[0].mxu0
      %v758 = vadd.f32 0.0, %v757
      %v759 = vpop.f32.mrb[0].mxu0
      %v760 = vpop.f32.mrb[0].mxu0
      %v761 = vadd.f32 0.0, %v760
      %v762 = vpop.f32.mrb[0].mxu0
      %763 = vmatprep.mubr.bf16.mxu0 0
      %764 = vmatmul.mubr.bf16.gmra.mrb[0].mxu0 %v647
      %v765 = vpop.f32.mrb[0].mxu0
      %v766 = vadd.f32 0.0, %v765
      %v767 = vpop.f32.mrb[0].mxu0
      %v768 = vpop.f32.mrb[0].mxu0
      %v769 = vadd.f32 0.0, %v768
      %v770 = vpop.f32.mrb[0].mxu0
      %771 = vmatprep.mubr.bf16.mxu0 0
      %772 = vmatmul.mubr.bf16.gmra.mrb[0].mxu0 %v648
      %v773 = vpop.f32.mrb[0].mxu0
      %v774 = vadd.f32 0.0, %v773
      %v775 = vpop.f32.mrb[0].mxu0
      %v776 = vpop.f32.mrb[0].mxu0
      %v777 = vadd.f32 0.0, %v776
      %v778 = vpop.f32.mrb[0].mxu0
      %779 = vmatprep.mubr.bf16.mxu0 0
      %780 = vmatmul.mubr.bf16.gmra.mrb[0].mxu0 %v649
      %v781 = vpop.f32.mrb[0].mxu0
      %v782 = vadd.f32 0.0, %v781
      %v783 = vpop.f32.mrb[0].mxu0
      %v784 = vpop.f32.mrb[0].mxu0
      %v785 = vadd.f32 0.0, %v784
      %v786 = vpop.f32.mrb[0].mxu0
      %787 = vmatprep.mubr.bf16.mxu0 0
      %788 = vmatmul.mubr.bf16.gmra.mrb[0].mxu0 %v650
      %v789 = vpop.f32.mrb[0].mxu0
      %v790 = vadd.f32 0.0, %v789
      %v791 = vpop.f32.mrb[0].mxu0
      %v792 = vpop.f32.mrb[0].mxu0
      %v793 = vadd.f32 0.0, %v792
      %v794 = vpop.f32.mrb[0].mxu0
      %795 = vdwg.mxu0
      %v796 = vpack.c.bf16 %v542, %v542
      %v797 = vpack.c.bf16 %v543, %v543
      %v798 = vpack.c.bf16 %v544, %v544
      %v799 = vpack.c.bf16 %v545, %v545
      %v800 = vpack.c.bf16 %v546, %v546
      %v801 = vpack.c.bf16 %v547, %v547
      %v802 = vpack.c.bf16 %v548, %v548
      %v803 = vpack.c.bf16 %v549, %v549
      %v812 = vunpack.c.l.b16 %v796
      %v813 = vunpack.c.l.b16 %v797
      %v814 = vunpack.c.l.b16 %v798
      %v815 = vunpack.c.l.b16 %v799
      %v816 = vunpack.c.l.b16 %v800
      %v817 = vunpack.c.l.b16 %v801
      %v818 = vunpack.c.l.b16 %v802
      %v819 = vunpack.c.l.b16 %v803
      %v820 = vrot.slane %v813, 7
      %vm821 = vcmask 1041409
      %v822 = vsel %vm821, %v820, %v812
      %v823 = vrot.slane %v814, 6
      %vm824 = vcmask 1042434
      %v825 = vsel %vm824, %v823, %v822
      %v826 = vrot.slane %v815, 5
      %vm827 = vcmask 1043459
      %v828 = vsel %vm827, %v826, %v825
      %v829 = vrot.slane %v816, 4
      %vm830 = vcmask 1044484
      %v831 = vsel %vm830, %v829, %v828
      %v832 = vrot.slane %v817, 3
      %vm833 = vcmask 1045509
      %v834 = vsel %vm833, %v832, %v831
      %v835 = vrot.slane %v818, 2
      %vm836 = vcmask 1046534
      %v837 = vsel %vm836, %v835, %v834
      %v838 = vrot.slane %v819, 1
      %vm839 = vcmask 1047559
      %v840 = vsel %vm839, %v838, %v837
      %v841 = vpack.c.b16 %v840, %v840
      %v859 = vunpack.c.l.b16 %v592
      %v860 = vunpack.c.l.b16 %v593
      %v861 = vunpack.c.l.b16 %v594
      %v862 = vunpack.c.l.b16 %v595
      %v863 = vunpack.c.l.b16 %v596
      %v864 = vunpack.c.l.b16 %v597
      %v865 = vunpack.c.l.b16 %v598
      %v866 = vunpack.c.l.b16 %v599
      %v867 = vunpack.c.l.b16 %v600
      %v868 = vunpack.c.l.b16 %v601
      %v869 = vunpack.c.l.b16 %v602
      %v870 = vunpack.c.l.b16 %v603
      %v871 = vunpack.c.l.b16 %v604
      %v872 = vunpack.c.l.b16 %v605
      %v873 = vunpack.c.l.b16 %v606
      %v874 = vunpack.c.l.b16 %v607
      %v875 = vpack.c.b16 %v860, %v859
      %v876 = vpack.c.b16 %v862, %v861
      %v877 = vpack.c.b16 %v864, %v863
      %v878 = vpack.c.b16 %v866, %v865
      %v879 = vpack.c.b16 %v868, %v867
      %v880 = vpack.c.b16 %v870, %v869
      %v881 = vpack.c.b16 %v872, %v871
      %v882 = vpack.c.b16 %v874, %v873
      %891 = vmatprep.subr.bf16.mxu0 0
      %892 = vmatpush1.bf16.msra.mxu0 %v875
      %893 = vmatprep.subr.bf16.mxu0 0
      %894 = vmatpush1.bf16.msra.mxu0 %v876
      %895 = vmatprep.subr.bf16.mxu0 0
      %896 = vmatpush1.bf16.msra.mxu0 %v877
      %897 = vmatprep.subr.bf16.mxu0 0
      %898 = vmatpush1.bf16.msra.mxu0 %v878
      %899 = vmatprep.subr.bf16.mxu0 0
      %900 = vmatpush1.bf16.msra.mxu0 %v879
      %901 = vmatprep.subr.bf16.mxu0 0
      %902 = vmatpush1.bf16.msra.mxu0 %v880
      %903 = vmatprep.subr.bf16.mxu0 0
      %904 = vmatpush1.bf16.msra.mxu0 %v881
      %905 = vmatprep.subr.bf16.mxu0 0
      %906 = vmatpush1.bf16.msra.mxu0 %v882
      %907 = vmatprep.subr.bf16.mxu0 0
      %908 = vmatpush1.bf16.msra.mxu0 0
      %909 = vmatprep.subr.bf16.mxu0 0
      %910 = vmatpush1.bf16.msra.mxu0 0
      %911 = vmatprep.subr.bf16.mxu0 0
      %912 = vmatpush1.bf16.msra.mxu0 0
      %913 = vmatprep.subr.bf16.mxu0 0
      %914 = vmatpush1.bf16.msra.mxu0 0
      %915 = vmatprep.subr.bf16.mxu0 0
      %916 = vmatpush1.bf16.msra.mxu0 0
      %917 = vmatprep.subr.bf16.mxu0 0
      %918 = vmatpush1.bf16.msra.mxu0 0
      %919 = vmatprep.subr.bf16.mxu0 0
      %920 = vmatpush1.bf16.msra.mxu0 0
      %921 = vmatprep.subr.bf16.mxu0 0
      %922 = vmatpush1.bf16.msra.mxu0 0
      %923 = vmatprep.mubr.bf16.mxu0 0
      %924 = vmatmul.mubr.bf16.gmra.mrb[0].mxu0 %v841
      %v925 = vpop.f32.mrb[0].mxu0
      %v926 = vadd.f32 0.0, %v925
      %v927 = vpop.f32.mrb[0].mxu0
      %v928 = vpop.f32.mrb[0].mxu0
      %v929 = vpop.f32.mrb[0].mxu0
      %930 = vdwg.mxu0
      %v931 = vpack.c.bf16 %v563, %v562
      %v948 = vunpack.c.l.b16 %v609
      %v949 = vunpack.c.l.b16 %v610
      %v950 = vunpack.c.l.b16 %v611
      %v951 = vunpack.c.l.b16 %v612
      %v952 = vunpack.c.l.b16 %v613
      %v953 = vunpack.c.l.b16 %v614
      %v954 = vunpack.c.l.b16 %v615
      %v955 = vunpack.c.l.b16 %v616
      %v956 = vunpack.c.l.b16 %v617
      %v957 = vunpack.c.l.b16 %v618
      %v958 = vunpack.c.l.b16 %v619
      %v959 = vunpack.c.l.b16 %v620
      %v960 = vunpack.c.l.b16 %v621
      %v961 = vunpack.c.l.b16 %v622
      %v962 = vunpack.c.l.b16 %v623
      %v963 = vunpack.c.l.b16 %v624
      %v964 = vpack.c.b16 %v949, %v948
      %v965 = vpack.c.b16 %v951, %v950
      %v966 = vpack.c.b16 %v953, %v952
      %v967 = vpack.c.b16 %v955, %v954
      %v968 = vpack.c.b16 %v957, %v956
      %v969 = vpack.c.b16 %v959, %v958
      %v970 = vpack.c.b16 %v961, %v960
      %v971 = vpack.c.b16 %v963, %v962
      %980 = vmatprep.subr.bf16.mxu0 0
      %981 = vmatpush1.bf16.msra.mxu0 %v964
      %982 = vmatprep.subr.bf16.mxu0 0
      %983 = vmatpush1.bf16.msra.mxu0 %v965
      %984 = vmatprep.subr.bf16.mxu0 0
      %985 = vmatpush1.bf16.msra.mxu0 %v966
      %986 = vmatprep.subr.bf16.mxu0 0
      %987 = vmatpush1.bf16.msra.mxu0 %v967
      %988 = vmatprep.subr.bf16.mxu0 0
      %989 = vmatpush1.bf16.msra.mxu0 %v968
      %990 = vmatprep.subr.bf16.mxu0 0
      %991 = vmatpush1.bf16.msra.mxu0 %v969
      %992 = vmatprep.subr.bf16.mxu0 0
      %993 = vmatpush1.bf16.msra.mxu0 %v970
      %994 = vmatprep.subr.bf16.mxu0 0
      %995 = vmatpush1.bf16.msra.mxu0 %v971
      %996 = vmatprep.subr.bf16.mxu0 0
      %997 = vmatpush1.bf16.msra.mxu0 0
      %998 = vmatprep.subr.bf16.mxu0 0
      %999 = vmatpush1.bf16.msra.mxu0 0
      %1000 = vmatprep.subr.bf16.mxu0 0
      %1001 = vmatpush1.bf16.msra.mxu0 0
      %1002 = vmatprep.subr.bf16.mxu0 0
      %1003 = vmatpush1.bf16.msra.mxu0 0
      %1004 = vmatprep.subr.bf16.mxu0 0
      %1005 = vmatpush1.bf16.msra.mxu0 0
      %1006 = vmatprep.subr.bf16.mxu0 0
      %1007 = vmatpush1.bf16.msra.mxu0 0
      %1008 = vmatprep.subr.bf16.mxu0 0
      %1009 = vmatpush1.bf16.msra.mxu0 0
      %1010 = vmatprep.subr.bf16.mxu0 0
      %1011 = vmatpush1.bf16.msra.mxu0 0
      %1012 = vmatprep.mubr.bf16.mxu0 0
      %1013 = vmatmul.mubr.bf16.gmra.mrb[0].mxu0 %v931
      %v1014 = vpop.f32.mrb[0].mxu0
      %v1015 = vadd.f32 0.0, %v1014
      %v1016 = vpop.f32.mrb[0].mxu0
      %v1017 = vpop.f32.mrb[0].mxu0
      %v1018 = vadd.f32 0.0, %v1017
      %v1019 = vpop.f32.mrb[0].mxu0
      %1020 = vdwg.mxu0
      %v1021 = vpack.c.bf16 %v574, %v574
      %v1023 = vcombine.high %v926, %v926
      %v1025 = vunpack.c.l.s4 1966171168
      %v1026 = vunpack.c.0.s8 %v1025
      %v1027 = vlaneseq
      %v1028 = vshrl.u32 %v1027, 7
      %v1029 = vsub.s32 %v1026, %v1028
      %v1030 = vrot.slane %v926, %v1029
      %v1032 = vunpack.c.l.s4 1966171168
      %v1033 = vunpack.c.0.s8 %v1032
      %v1034 = vlaneseq
      %v1035 = vshrl.u32 %v1034, 7
      %v1036 = vsub.s32 %v1033, %v1035
      %v1037 = vrot.slane %v1023, %v1036
      %v1038 = vcombine.high %v1030, %v1030
      %v1039 = vcombine.high %v1037, %v1037
      %v1041 = vunpack.c.l.s4 1966171168
      %v1042 = vunpack.c.0.s8 %v1041
      %v1043 = vlaneseq
      %v1044 = vshrl.u32 %v1043, 7
      %v1045 = vsub.s32 %v1042, %v1044
      %v1046 = vrot.slane %v1030, %v1045
      %v1048 = vunpack.c.l.s4 1966171168
      %v1049 = vunpack.c.0.s8 %v1048
      %v1050 = vlaneseq
      %v1051 = vshrl.u32 %v1050, 7
      %v1052 = vsub.s32 %v1049, %v1051
      %v1053 = vrot.slane %v1037, %v1052
      %v1055 = vunpack.c.l.s4 1966171168
      %v1056 = vunpack.c.0.s8 %v1055
      %v1057 = vlaneseq
      %v1058 = vshrl.u32 %v1057, 7
      %v1059 = vsub.s32 %v1056, %v1058
      %v1060 = vrot.slane %v1038, %v1059
      %v1062 = vunpack.c.l.s4 1966171168
      %v1063 = vunpack.c.0.s8 %v1062
      %v1064 = vlaneseq
      %v1065 = vshrl.u32 %v1064, 7
      %v1066 = vsub.s32 %v1063, %v1065
      %v1067 = vrot.slane %v1039, %v1066
      %v1068 = vcombine.high %v1046, %v1046
      %v1069 = vcombine.high %v1053, %v1053
      %v1070 = vcombine.high %v1060, %v1060
      %v1071 = vcombine.high %v1067, %v1067
      %v1072 = vlaneseq
      %v1073 = vshrl.u32 %v1072, 7
      %v1074 = vsub.s32 0, %v1073
      %v1075 = vrot.slane %v1046, %v1074
      %v1076 = vlaneseq
      %v1077 = vshrl.u32 %v1076, 7
      %v1078 = vsub.s32 0, %v1077
      %v1079 = vrot.slane %v1060, %v1078
      %v1080 = vlaneseq
      %v1081 = vshrl.u32 %v1080, 7
      %v1082 = vsub.s32 0, %v1081
      %v1083 = vrot.slane %v1068, %v1082
      %v1084 = vlaneseq
      %v1085 = vshrl.u32 %v1084, 7
      %v1086 = vsub.s32 0, %v1085
      %v1087 = vrot.slane %v1070, %v1086
      %v1088 = vlaneseq
      %v1089 = vshrl.u32 %v1088, 7
      %v1090 = vsub.s32 0, %v1089
      %v1091 = vrot.slane %v1053, %v1090
      %v1092 = vlaneseq
      %v1093 = vshrl.u32 %v1092, 7
      %v1094 = vsub.s32 0, %v1093
      %v1095 = vrot.slane %v1067, %v1094
      %v1096 = vlaneseq
      %v1097 = vshrl.u32 %v1096, 7
      %v1098 = vsub.s32 0, %v1097
      %v1099 = vrot.slane %v1069, %v1098
      %v1100 = vlaneseq
      %v1101 = vshrl.u32 %v1100, 7
      %v1102 = vsub.s32 0, %v1101
      %v1103 = vrot.slane %v1071, %v1102
      %v1112 = vadd.f32 %v734, %v1075
      %v1113 = vadd.f32 %v737, %v1075
      %v1114 = vadd.f32 %v742, %v1079
      %v1115 = vadd.f32 %v745, %v1079
      %v1116 = vadd.f32 %v750, %v1083
      %v1117 = vadd.f32 %v753, %v1083
      %v1118 = vadd.f32 %v758, %v1087
      %v1119 = vadd.f32 %v761, %v1087
      %v1120 = vadd.f32 %v766, %v1091
      %v1121 = vadd.f32 %v769, %v1091
      %v1122 = vadd.f32 %v774, %v1095
      %v1123 = vadd.f32 %v777, %v1095
      %v1124 = vadd.f32 %v782, %v1099
      %v1125 = vadd.f32 %v785, %v1099
      %v1126 = vadd.f32 %v790, %v1103
      %v1127 = vadd.f32 %v793, %v1103
      %v1128 = vadd.f32 %v1112, %v1015
      %v1129 = vadd.f32 %v1113, %v1018
      %v1130 = vadd.f32 %v1114, %v1015
      %v1131 = vadd.f32 %v1115, %v1018
      %v1132 = vadd.f32 %v1116, %v1015
      %v1133 = vadd.f32 %v1117, %v1018
      %v1134 = vadd.f32 %v1118, %v1015
      %v1135 = vadd.f32 %v1119, %v1018
      %v1136 = vadd.f32 %v1120, %v1015
      %v1137 = vadd.f32 %v1121, %v1018
      %v1138 = vadd.f32 %v1122, %v1015
      %v1139 = vadd.f32 %v1123, %v1018
      %v1140 = vadd.f32 %v1124, %v1015
      %v1141 = vadd.f32 %v1125, %v1018
      %v1142 = vadd.f32 %v1126, %v1015
      %v1143 = vadd.f32 %v1127, %v1018
      %v1160 = vunpack.c.l.b16 %v626
      %v1161 = vunpack.c.l.b16 %v627
      %v1162 = vunpack.c.l.b16 %v628
      %v1163 = vunpack.c.l.b16 %v629
      %v1164 = vunpack.c.l.b16 %v630
      %v1165 = vunpack.c.l.b16 %v631
      %v1166 = vunpack.c.l.b16 %v632
      %v1167 = vunpack.c.l.b16 %v633
      %v1168 = vunpack.c.l.b16 %v634
      %v1169 = vunpack.c.l.b16 %v635
      %v1170 = vunpack.c.l.b16 %v636
      %v1171 = vunpack.c.l.b16 %v637
      %v1172 = vunpack.c.l.b16 %v638
      %v1173 = vunpack.c.l.b16 %v639
      %v1174 = vunpack.c.l.b16 %v640
      %v1175 = vunpack.c.l.b16 %v641
      %v1176 = vpack.c.b16 %v1161, %v1160
      %v1177 = vpack.c.b16 %v1163, %v1162
      %v1178 = vpack.c.b16 %v1165, %v1164
      %v1179 = vpack.c.b16 %v1167, %v1166
      %v1180 = vpack.c.b16 %v1169, %v1168
      %v1181 = vpack.c.b16 %v1171, %v1170
      %v1182 = vpack.c.b16 %v1173, %v1172
      %v1183 = vpack.c.b16 %v1175, %v1174
      %1192 = vmatprep.subr.bf16.mxu0 0
      %1193 = vmatpush1.bf16.msra.mxu0 %v1176
      %1194 = vmatprep.subr.bf16.mxu0 0
      %1195 = vmatpush1.bf16.msra.mxu0 %v1177
      %1196 = vmatprep.subr.bf16.mxu0 0
      %1197 = vmatpush1.bf16.msra.mxu0 %v1178
      %1198 = vmatprep.subr.bf16.mxu0 0
      %1199 = vmatpush1.bf16.msra.mxu0 %v1179
      %1200 = vmatprep.subr.bf16.mxu0 0
      %1201 = vmatpush1.bf16.msra.mxu0 %v1180
      %1202 = vmatprep.subr.bf16.mxu0 0
      %1203 = vmatpush1.bf16.msra.mxu0 %v1181
      %1204 = vmatprep.subr.bf16.mxu0 0
      %1205 = vmatpush1.bf16.msra.mxu0 %v1182
      %1206 = vmatprep.subr.bf16.mxu0 0
      %1207 = vmatpush1.bf16.msra.mxu0 %v1183
      %1208 = vmatprep.subr.bf16.mxu0 0
      %1209 = vmatpush1.bf16.msra.mxu0 0
      %1210 = vmatprep.subr.bf16.mxu0 0
      %1211 = vmatpush1.bf16.msra.mxu0 0
      %1212 = vmatprep.subr.bf16.mxu0 0
      %1213 = vmatpush1.bf16.msra.mxu0 0
      %1214 = vmatprep.subr.bf16.mxu0 0
      %1215 = vmatpush1.bf16.msra.mxu0 0
      %1216 = vmatprep.subr.bf16.mxu0 0
      %1217 = vmatpush1.bf16.msra.mxu0 0
      %1218 = vmatprep.subr.bf16.mxu0 0
      %1219 = vmatpush1.bf16.msra.mxu0 0
      %1220 = vmatprep.subr.bf16.mxu0 0
      %1221 = vmatpush1.bf16.msra.mxu0 0
      %1222 = vmatprep.subr.bf16.mxu0 0
      %1223 = vmatpush1.bf16.msra.mxu0 0
      %1224 = vmatprep.mubr.bf16.mxu0 0
      %1225 = vmatmul.mubr.bf16.gmra.mrb[0].mxu0 %v1021
      %v1226 = vpop.f32.mrb[0].mxu0
      %v1227 = vadd.f32 %v642, %v1226
      %v1228 = vpop.f32.mrb[0].mxu0
      %v1229 = vpop.f32.mrb[0].mxu0
      %v1230 = vpop.f32.mrb[0].mxu0
      %1231 = vdwg.mxu0
      %v1232 = vlaneseq
      %v1233 = vshrl.u32 %v1232, 7
      %v1234 = vsub.s32 0, %v1233
      %v1235 = vrot.slane %v1227, %v1234
      %v1236 = vadd.f32 %v1128, %v1235
      %v1237 = vadd.f32 %v1129, %v1235
      %v1238 = vadd.f32 %v1130, %v1235
      %v1239 = vadd.f32 %v1131, %v1235
      %v1240 = vadd.f32 %v1132, %v1235
      %v1241 = vadd.f32 %v1133, %v1235
      %v1242 = vadd.f32 %v1134, %v1235
      %v1243 = vadd.f32 %v1135, %v1235
      %v1244 = vadd.f32 %v1136, %v1235
      %v1245 = vadd.f32 %v1137, %v1235
      %v1246 = vadd.f32 %v1138, %v1235
      %v1247 = vadd.f32 %v1139, %v1235
      %v1248 = vadd.f32 %v1140, %v1235
      %v1249 = vadd.f32 %v1141, %v1235
      %v1250 = vadd.f32 %v1142, %v1235
      %v1251 = vadd.f32 %v1143, %v1235
      %p1252 = scmp.lt.s32.totalorder %s20, 2
      // Predicated region
      $region53: #{decoder_forward.1} parent=47 // pred_check
        %p1253 = pneg %p1252
      $region54: #{decoder_forward.1} parent=47 // pred_check_branch
        %1255 = sbr.rel (%p1253) target = $region56
      $region55: #{decoder_forward.1} parent=47 // pred_region
        %v1256 = vmax.f32 %v1236, 0.0
        %v1257 = vmax.f32 %v1237, 0.0
        %v1258 = vmax.f32 %v1238, 0.0
        %v1259 = vmax.f32 %v1239, 0.0
        %v1260 = vmax.f32 %v1240, 0.0
        %v1261 = vmax.f32 %v1241, 0.0
        %v1262 = vmax.f32 %v1242, 0.0
        %v1263 = vmax.f32 %v1243, 0.0
        %v1264 = vmax.f32 %v1244, 0.0
        %v1265 = vmax.f32 %v1245, 0.0
        %v1266 = vmax.f32 %v1246, 0.0
        %v1267 = vmax.f32 %v1247, 0.0
        %v1268 = vmax.f32 %v1248, 0.0
        %v1269 = vmax.f32 %v1249, 0.0
        %v1270 = vmax.f32 %v1250, 0.0
        %v1271 = vmax.f32 %v1251, 0.0
        %v1272 = vmul.f32 %v1256, %v352
        %v1273 = vmul.f32 %v1257, %v357
        %v1274 = vmul.f32 %v1258, %v362
        %v1275 = vmul.f32 %v1259, %v367
        %v1276 = vmul.f32 %v1260, %v372
        %v1277 = vmul.f32 %v1261, %v377
        %v1278 = vmul.f32 %v1262, %v382
        %v1279 = vmul.f32 %v1263, %v387
        %v1280 = vmul.f32 %v1264, %v392
        %v1281 = vmul.f32 %v1265, %v397
        %v1282 = vmul.f32 %v1266, %v402
        %v1283 = vmul.f32 %v1267, %v407
        %v1284 = vmul.f32 %v1268, %v412
        %v1285 = vmul.f32 %v1269, %v417
        %v1286 = vmul.f32 %v1270, %v422
        %v1287 = vmul.f32 %v1271, %v427
        %1288 = vst [vmem:[%s7] sm:$0xff] %v1272
        %1289 = vst [vmem:[%s7 + $0x8] sm:$0xff] %v1273
        %1290 = vst [vmem:[%s7 + $0x10] sm:$0xff] %v1274
        %1291 = vst [vmem:[%s7 + $0x18] sm:$0xff] %v1275
        %1292 = vst [vmem:[%s7 + $0x20] sm:$0xff] %v1276
        %1293 = vst [vmem:[%s7 + $0x28] sm:$0xff] %v1277
        %1294 = vst [vmem:[%s7 + $0x30] sm:$0xff] %v1278
        %1295 = vst [vmem:[%s7 + $0x38] sm:$0xff] %v1279
        %1296 = vst [vmem:[%s7 + $0x40] sm:$0xff] %v1280
        %1297 = vst [vmem:[%s7 + $0x48] sm:$0xff] %v1281
        %1298 = vst [vmem:[%s7 + $0x50] sm:$0xff] %v1282
        %1299 = vst [vmem:[%s7 + $0x58] sm:$0xff] %v1283
        %1300 = vst [vmem:[%s7 + $0x60] sm:$0xff] %v1284
        %1301 = vst [vmem:[%s7 + $0x68] sm:$0xff] %v1285
        %1302 = vst [vmem:[%s7 + $0x70] sm:$0xff] %v1286
        %1303 = vst [vmem:[%s7 + $0x78] sm:$0xff] %v1287
      $region56: #{decoder_forward.1} parent=47 // pred_fallthru
        _
      %p1304 = scmp.eq.s32.totalorder %s20, 2
      // Predicated region
      $region57: #{decoder_forward.1} parent=47 // pred_check
        %p1305 = pneg %p1304
      $region58: #{decoder_forward.1} parent=47 // pred_check_branch
        %1307 = sbr.rel (%p1305) target = $region60
      $region59: #{decoder_forward.1} parent=47 // pred_region
        %1308 = vst [vmem:[%s7] sm:$0xff] %v1236
        %1309 = vst [vmem:[%s7 + $0x8] sm:$0xff] %v1237
        %1310 = vst [vmem:[%s7 + $0x10] sm:$0xff] %v1238
        %1311 = vst [vmem:[%s7 + $0x18] sm:$0xff] %v1239
        %1312 = vst [vmem:[%s7 + $0x20] sm:$0xff] %v1240
        %1313 = vst [vmem:[%s7 + $0x28] sm:$0xff] %v1241
        %1314 = vst [vmem:[%s7 + $0x30] sm:$0xff] %v1242
        %1315 = vst [vmem:[%s7 + $0x38] sm:$0xff] %v1243
        %1316 = vst [vmem:[%s7 + $0x40] sm:$0xff] %v1244
        %1317 = vst [vmem:[%s7 + $0x48] sm:$0xff] %v1245
        %1318 = vst [vmem:[%s7 + $0x50] sm:$0xff] %v1246
        %1319 = vst [vmem:[%s7 + $0x58] sm:$0xff] %v1247
        %1320 = vst [vmem:[%s7 + $0x60] sm:$0xff] %v1248
        %1321 = vst [vmem:[%s7 + $0x68] sm:$0xff] %v1249
        %1322 = vst [vmem:[%s7 + $0x70] sm:$0xff] %v1250
        %1323 = vst [vmem:[%s7 + $0x78] sm:$0xff] %v1251
      $region60: #{decoder_forward.1} parent=47 // pred_fallthru
        _
      // Predicated region
      $region61: #{decoder_forward.1} parent=47 // pred_check
        %p1324 = pneg %p190
      $region62: #{decoder_forward.1} parent=47 // pred_check_branch
        %1326 = sbr.rel (%p1324) target = $region64
      $region63: #{decoder_forward.1} parent=47 // pred_region
        _
      $region64: #{decoder_forward.1} parent=47 // pred_fallthru
        _
      // Predicated region
      $region65: #{decoder_forward.1} parent=47 // pred_check
        %p1327 = pneg %p190
      $region66: #{decoder_forward.1} parent=47 // pred_check_branch
        %1329 = sbr.rel (%p1327) target = $region68
      $region67: #{decoder_forward.1} parent=47 // pred_region
        _
      $region68: #{decoder_forward.1} parent=47 // pred_fallthru
        _
    $region48: #{decoder_forward.1} parent=5 // pred_fallthru
      _
    %p1330 = scmp.le.s32.totalorder 2, %s15
    // Predicated region
    $region69: #{decoder_forward.1} parent=5 // pred_check
      %p1331 = pneg %p1330
    $region70: #{decoder_forward.1} parent=5 // pred_check_branch
      %1333 = sbr.rel (%p1331) target = $region72
    $region71: #{decoder_forward.1} parent=5 // pred_region
      %s1334 = ssub.s32 %s15, 2
    $region72: #{decoder_forward.1} parent=5 // pred_fallthru
      _
  $region6: #{decoder_forward.1} parent=0 // loop_footer
    %s19 = sadd.s32 1, %s15
  $region7: #{decoder_forward.1} parent=0 // loop_footer_branch
    %14 = sbr.rel target = $region3
  $region8: #{decoder_forward.1} parent=0 // loop_exit
    _

</llo_original>
